<compile_context>
chip_gen: v7x
topology: tpu7x:2x2x1
jax: 0.10.0
libtpu: 0.0.40
codegen_flags: <defaults>
</compile_context>

<pallas_src>
import functools
import math

import jax
import jax.numpy as jnp
from jax.experimental import pallas as pl
from jax.experimental.pallas import tpu as pltpu


def _round_up(x, m):
    return ((x + m - 1) // m) * m


def _vmem_capacity_bytes():
    """Physical VMEM of the current device (generation-safe clamp)."""
    try:
        return int(pltpu.get_tpu_info().vmem_capacity_bytes)
    except Exception:
        # Conservative fallback (v7x has 64 MiB per TensorCore).
        return 64 * 1024 * 1024


def _loglik_kernel(bias_ref, z_ref, mu_ref, w_ref, out_ref):
    # bias_ref: (1, 1) SMEM scalar; z_ref: (tile_n, D);
    # mu_ref: (1, D); w_ref: (D, 1) = -0.5 * 1/sigma^2; out_ref: (tile_n, 1)
    diff = z_ref[...].astype(jnp.float32) - mu_ref[...]      # VPU
    sq = diff * diff                                          # VPU
    # Weighted lane-reduce on the MXU (idle otherwise): (tile_n, D) x (D, 1).
    quad = jnp.dot(sq, w_ref[...], preferred_element_type=jnp.float32)
    out_ref[...] = (quad - bias_ref[0, 0]).astype(out_ref.dtype)


@functools.partial(jax.jit, static_argnames=("tile_n",))
def gaussian_log_likelihood(z, mu, log_sigma, *, tile_n=8192):
    """Pallas-accelerated diagonal-Gaussian log-likelihood.

    z: (N, D); mu, log_sigma: (D,) float32.  Returns (N,) float32.
    """
    N, D = z.shape
    itemsize = jnp.dtype(z.dtype).itemsize
    sub = {4: 8, 2: 16, 1: 32}.get(itemsize, 8)   # sublane quantum per dtype

    mu2 = mu.reshape(1, D).astype(jnp.float32)
    # -0.5 / sigma^2 baked into the MXU reduce weights, as a (D, 1) column.
    w_col = (-0.5 * jnp.exp(-2.0 * log_sigma)).reshape(D, 1).astype(jnp.float32)
    # Hoisted loop-invariant scalar: sum(log sigma) + 0.5 * D * log(2*pi)
    bias = (jnp.sum(log_sigma).astype(jnp.float32)
            + jnp.float32(0.5 * D * math.log(2.0 * math.pi))).reshape(1, 1)

    # --- tile sizing (all Python-level: N, D, tile_n are static) ------------
    n_pad = _round_up(N, sub)
    tile_n = _round_up(max(sub, int(tile_n)), sub)
    tile_n = min(tile_n, n_pad)
    # Keep >= 2 grid steps for large batches so the "parallel" batch axis can
    # shard across v7x's two TensorCores; skip for small batches where it only
    # doubles the fixed ~0.35us per-step overhead on single-TC parts.
    if n_pad >= 2 * 1024:
        half = _round_up(pl.cdiv(n_pad, 2), sub)
        tile_n = min(tile_n, half)

    # Shrink the tile until double-buffered z + output + params fit physical
    # VMEM with headroom (v7x: 64 MiB per TC; v5e/v6e: 128 MiB).
    phys_vmem = _vmem_capacity_bytes()

    def _tile_bytes(t):
        return (2 * t * D * itemsize        # double-buffered z tiles
                + 2 * t * 4                 # double-buffered (t, 1) output
                + 2 * (2 * D) * 4)          # mu row + w column (buffered)

    budget = phys_vmem - (4 << 20)
    while tile_n > sub and _tile_bytes(tile_n) > budget:
        tile_n = max(sub, _round_up(tile_n // 2, sub))

    grid_n = pl.cdiv(N, tile_n)

    bytes_accessed = N * D * itemsize + N * 4 + 2 * D * 4 + 4
    cost = pl.CostEstimate(flops=4 * N * D, transcendentals=0,
                           bytes_accessed=bytes_accessed)

    vmem_limit = min(phys_vmem,
                     max(_tile_bytes(tile_n) + (2 << 20), 32 * 1024 * 1024))

    out = pl.pallas_call(
        _loglik_kernel,
        out_shape=jax.ShapeDtypeStruct((N, 1), jnp.float32),
        grid_spec=pltpu.PrefetchScalarGridSpec(
            num_scalar_prefetch=0,
            grid=(grid_n,),
            in_specs=[
                pl.BlockSpec(memory_space=pltpu.MemorySpace.SMEM),   # bias scalar
                pl.BlockSpec((tile_n, D), lambda i: (i, 0)),         # z tile
                pl.BlockSpec((1, D), lambda i: (0, 0)),              # mu row
                pl.BlockSpec((D, 1), lambda i: (0, 0)),              # -0.5/sigma^2 col
            ],
            out_specs=pl.BlockSpec((tile_n, 1), lambda i: (i, 0)),
        ),
        compiler_params=pltpu.CompilerParams(
            dimension_semantics=("parallel",),
            vmem_limit_bytes=int(vmem_limit),
        ),
        cost_estimate=cost,
    )(bias, z, mu2, w_col)
    return out[:, 0]


class AdversarialDistributionAEPallas:
    """JAX/Pallas port of AdversarialDistributionAE's forward pass.

    forward(z) -> model.log_likelihood(z), with the latent model realized as a
    deterministic diagonal Gaussian (parameters built in __init__).
    """

    def __init__(self, z_dim=128, T=1.0, seed=0):
        self.T = T
        self.baseline = jnp.asarray(0.0, dtype=jnp.float32)  # register_buffer
        self.momentum = 0.99
        k1, k2 = jax.random.split(jax.random.PRNGKey(seed))
        # deterministic synthetic "model" parameters
        self.mu = 0.1 * jax.random.normal(k1, (z_dim,), dtype=jnp.float32)
        self.log_sigma = 0.05 * jax.random.normal(k2, (z_dim,), dtype=jnp.float32)

    def forward(self, z):
        """computes log probability"""
        return self.log_likelihood(z)

    def log_likelihood(self, z):
        return gaussian_log_likelihood(z, self.mu, self.log_sigma)

    def __call__(self, z):
        return self.forward(z)


def _reference_log_likelihood(z, mu, log_sigma):
    sigma = jnp.exp(log_sigma)
    logp = (-0.5 * ((z - mu[None, :]) / sigma[None, :]) ** 2
            - log_sigma[None, :]
            - 0.5 * math.log(2.0 * math.pi))
    return jnp.sum(logp, axis=-1)


if __name__ == "__main__":
    D = 128   # latent dim mapped to lanes
    module = AdversarialDistributionAEPallas(z_dim=D, T=1.0, seed=0)

    # Small smoke test (batch = 8).
    z_small = jax.random.normal(jax.random.PRNGKey(0), (8, D), dtype=jnp.float32)
    logp_small = jax.block_until_ready(module(z_small))
    ref_small = _reference_log_likelihood(z_small, module.mu, module.log_sigma)
    assert logp_small.shape == (8,)
    assert jnp.allclose(logp_small, ref_small, rtol=1e-5, atol=1e-3), (
        f"mismatch: {logp_small} vs {ref_small}")

    # Batch not a multiple of the tile -> exercises cdiv grid + masked last block.
    z_odd = jax.random.normal(jax.random.PRNGKey(1), (200, D), dtype=jnp.float32)
    logp_odd = jax.block_until_ready(module(z_odd))
    ref_odd = _reference_log_likelihood(z_odd, module.mu, module.log_sigma)
    assert logp_odd.shape == (200,)
    assert jnp.allclose(logp_odd, ref_odd, rtol=1e-5, atol=1e-3), (
        f"mismatch: max err {jnp.max(jnp.abs(logp_odd - ref_odd))}")

    # Larger batch -> exercises the multi-step grid / large-tile path.
    z_big = jax.random.normal(jax.random.PRNGKey(2), (4096, D), dtype=jnp.float32)
    logp_big = jax.block_until_ready(module(z_big))
    ref_big = _reference_log_likelihood(z_big, module.mu, module.log_sigma)
    assert logp_big.shape == (4096,)
    assert jnp.allclose(logp_big, ref_big, rtol=1e-5, atol=1e-3), (
        f"mismatch: max err {jnp.max(jnp.abs(logp_big - ref_big))}")

    print("KERNEL_OK")
</pallas_src>

<mosaic_0001>
module attributes {stable_mosaic.version = 11 : i64} {
  func.func @_loglik_kernel(%arg0: i32, %arg1: memref<1x1xf32, #tpu.memory_space<smem>>, %arg2: memref<8x128xf32, #tpu.memory_space<vmem>>, %arg3: memref<1x128xf32, #tpu.memory_space<vmem>>, %arg4: memref<128x1xf32, #tpu.memory_space<vmem>>, %arg5: memref<8x1xf32, #tpu.memory_space<vmem>>) attributes {dimension_semantics = [#tpu.dimension_semantics<parallel>], iteration_bounds = array<i64: 1>, scalar_prefetch = 0 : i64, scratch_operands = 0 : i64, tpu.core_type = #tpu.core_type<tc>, window_params = [{transform_indices = @transform_0, window_bounds = array<i64: 1, 1>}, {transform_indices = @transform_1, window_bounds = array<i64: 8, 128>}, {pipeline_mode = #tpu.pipeline_mode<synchronous>, transform_indices = @transform_2, window_bounds = array<i64: 1, 128>}, {pipeline_mode = #tpu.pipeline_mode<synchronous>, transform_indices = @transform_3, window_bounds = array<i64: 128, 1>}, {transform_indices = @transform_4, window_bounds = array<i64: 8, 1>}]} {
    %c0 = arith.constant 0 : index
    %c0_0 = arith.constant 0 : index
    %0 = vector.load %arg2[%c0, %c0_0] : memref<8x128xf32, #tpu.memory_space<vmem>>, vector<8x128xf32>
    %c0_1 = arith.constant 0 : index
    %c0_2 = arith.constant 0 : index
    %1 = vector.load %arg3[%c0_1, %c0_2] : memref<1x128xf32, #tpu.memory_space<vmem>>, vector<1x128xf32>
    %2 = vector.broadcast %1 : vector<1x128xf32> to vector<8x128xf32>
    %3 = arith.subf %0, %2 : vector<8x128xf32>
    %4 = arith.mulf %3, %3 : vector<8x128xf32>
    %c0_3 = arith.constant 0 : index
    %c0_4 = arith.constant 0 : index
    %5 = vector.load %arg4[%c0_3, %c0_4] : memref<128x1xf32, #tpu.memory_space<vmem>>, vector<128x1xf32>
    %cst = arith.constant dense<0.000000e+00> : vector<8x1xf32>
    %6 = tpu.matmul %4, %5, %cst {dimension_numbers = #tpu.dot_dimension_numbers<[1], [0], [0], [1], [0, 0, 1, 1], [], []>} : vector<8x128xf32>, vector<128x1xf32>, vector<8x1xf32> -> vector<8x1xf32>
    %c0_5 = arith.constant 0 : index
    %c0_6 = arith.constant 0 : index
    %7 = memref.load %arg1[%c0_5, %c0_6] : memref<1x1xf32, #tpu.memory_space<smem>>
    %8 = vector.broadcast %7 : f32 to vector<8x1xf32>
    %9 = arith.subf %6, %8 : vector<8x1xf32>
    %c0_7 = arith.constant 0 : index
    %c0_8 = arith.constant 0 : index
    %10 = vector.load %arg5[%c0_7, %c0_8] : memref<8x1xf32, #tpu.memory_space<vmem>>, vector<8x1xf32>
    tpu.vector_store %arg5[%c0_7, %c0_8], %9 {strides = array<i32>} : memref<8x1xf32, #tpu.memory_space<vmem>>, vector<8x1xf32>,
    return
  }
  func.func @transform_0(%arg0: i32) -> (i32, i32) {
    %c0_i32 = arith.constant 0 : i32
    %c0_i32_0 = arith.constant 0 : i32
    %c0_i32_1 = arith.constant 0 : i32
    return %c0_i32, %c0_i32_0 : i32, i32
  }
  func.func @transform_1(%arg0: i32) -> (i32, i32) {
    %c0_i32 = arith.constant 0 : i32
    %c0_i32_0 = arith.constant 0 : i32
    return %arg0, %c0_i32 : i32, i32
  }
  func.func @transform_2(%arg0: i32) -> (i32, i32) {
    %c0_i32 = arith.constant 0 : i32
    %c0_i32_0 = arith.constant 0 : i32
    %c0_i32_1 = arith.constant 0 : i32
    return %c0_i32, %c0_i32_0 : i32, i32
  }
  func.func @transform_3(%arg0: i32) -> (i32, i32) {
    %c0_i32 = arith.constant 0 : i32
    %c0_i32_0 = arith.constant 0 : i32
    %c0_i32_1 = arith.constant 0 : i32
    return %c0_i32, %c0_i32_0 : i32, i32
  }
  func.func @transform_4(%arg0: i32) -> (i32, i32) {
    %c0_i32 = arith.constant 0 : i32
    %c0_i32_0 = arith.constant 0 : i32
    return %arg0, %c0_i32 : i32, i32
  }
}

</mosaic_0001>

<llo_original>
// kernel: gaussian_log_likelihood.1
$region0: #{gaussian_log_likelihood.1}
  #allocation0 [shape = 'u32[]', space=smem, size = 0x4, offset = 0x4, fixed_abs, tag = 'smem constant byte address 0x4 - core index']
  #allocation1 [shape = 'u32[144,128]{1,0:T(1,128)}', space=vmem, size = 0x12000, scoped, tag = 'internal scratch']
  #allocation2 [shape = 'f32[1,1]{1,0:T(1,128)S(6)}', space=smem, size = 0x200, scoped, tag = 'scoped memory for gaussian_log_likelihood.1']
  %s0 = inlined_call_operand.<no memory space> [shape: f32[1,1], index: 0, kind: input, shape index: {}]
  %s1 = inlined_call_operand.vmem [shape: f32[8,128], index: 1, kind: input, shape index: {}]
  %s2 = inlined_call_operand.vmem [shape: f32[1,128], index: 2, kind: input, shape index: {}]
  %s3 = inlined_call_operand.vmem [shape: f32[128,1], index: 3, kind: input, shape index: {}]
  %s4 = inlined_call_operand.vmem [shape: f32[8,1], index: 4, kind: output, shape index: {}]
  %s5 = sld [smem:[#allocation0]]
  $region26: #{gaussian_log_likelihood.1} parent=0
    _
  %s7 = ssub.s32 1, %s5
  %s8 = scalar_select 0, %s7, %s5
  %9 = sst [smem:[#allocation2]] %s0
  // Predicated region
  $region2: #{gaussian_log_likelihood.1} parent=0 // pred_check
    _
  $region3: #{gaussian_log_likelihood.1} parent=0 // pred_check_branch
    %11 = sbr.rel (0) target = $region5
  $region4: #{gaussian_log_likelihood.1} parent=0 // pred_region
    _
  $region5: #{gaussian_log_likelihood.1} parent=0 // pred_fallthru
    _
  // Predicated region
  $region6: #{gaussian_log_likelihood.1} parent=0 // pred_check
    _
  $region7: #{gaussian_log_likelihood.1} parent=0 // pred_check_branch
    %13 = sbr.rel (0) target = $region9
  $region8: #{gaussian_log_likelihood.1} parent=0 // pred_region
    _
  $region9: #{gaussian_log_likelihood.1} parent=0 // pred_fallthru
    _
  // Predicated region
  $region10: #{gaussian_log_likelihood.1} parent=0 // pred_check
    _
  $region11: #{gaussian_log_likelihood.1} parent=0 // pred_check_branch
    %15 = sbr.rel (0) target = $region13
  $region12: #{gaussian_log_likelihood.1} parent=0 // pred_region
    _
  $region13: #{gaussian_log_likelihood.1} parent=0 // pred_fallthru
    _
  // Predicated region
  $region14: #{gaussian_log_likelihood.1} parent=0 // pred_check
    _
  $region15: #{gaussian_log_likelihood.1} parent=0 // pred_check_branch
    %17 = sbr.rel (0) target = $region17
  $region16: #{gaussian_log_likelihood.1} parent=0 // pred_region
    _
  $region17: #{gaussian_log_likelihood.1} parent=0 // pred_fallthru
    _
  %v18 = vld [vmem:[%s1] sm:$0xff]
  %v19 = vld [vmem:[%s2] sm:$0x1]
  %v21 = vlaneseq
  %v22 = vshrl.u32 %v21, 7
  %v23 = vsub.s32 0, %v22
  %v24 = vrot.slane %v19, %v23
  %v26 = vsub.f32 %v18, %v24
  %v27 = vmul.f32 %v26, %v26
  %v28 = vld [vmem:[%s3] sm:$0xff]
  %v29 = vld [vmem:[%s3 + $0x8] sm:$0xff]
  %v30 = vld [vmem:[%s3 + $0x10] sm:$0xff]
  %v31 = vld [vmem:[%s3 + $0x18] sm:$0xff]
  %v32 = vld [vmem:[%s3 + $0x20] sm:$0xff]
  %v33 = vld [vmem:[%s3 + $0x28] sm:$0xff]
  %v34 = vld [vmem:[%s3 + $0x30] sm:$0xff]
  %v35 = vld [vmem:[%s3 + $0x38] sm:$0xff]
  %v36 = vld [vmem:[%s3 + $0x40] sm:$0xff]
  %v37 = vld [vmem:[%s3 + $0x48] sm:$0xff]
  %v38 = vld [vmem:[%s3 + $0x50] sm:$0xff]
  %v39 = vld [vmem:[%s3 + $0x58] sm:$0xff]
  %v40 = vld [vmem:[%s3 + $0x60] sm:$0xff]
  %v41 = vld [vmem:[%s3 + $0x68] sm:$0xff]
  %v42 = vld [vmem:[%s3 + $0x70] sm:$0xff]
  %v43 = vld [vmem:[%s3 + $0x78] sm:$0xff]
  %44 = vmatprep.subr.mxu0 0.0
  %45 = vmatpush1.msra.mxu0 %v28
  %46 = vmatprep.subr.mxu0 0.0
  %47 = vmatpush1.msra.mxu0 %v29
  %48 = vmatprep.subr.mxu0 0.0
  %49 = vmatpush1.msra.mxu0 %v30
  %50 = vmatprep.subr.mxu0 0.0
  %51 = vmatpush1.msra.mxu0 %v31
  %52 = vmatprep.subr.mxu0 0.0
  %53 = vmatpush1.msra.mxu0 %v32
  %54 = vmatprep.subr.mxu0 0.0
  %55 = vmatpush1.msra.mxu0 %v33
  %56 = vmatprep.subr.mxu0 0.0
  %57 = vmatpush1.msra.mxu0 %v34
  %58 = vmatprep.subr.mxu0 0.0
  %59 = vmatpush1.msra.mxu0 %v35
  %60 = vmatprep.subr.mxu0 0.0
  %61 = vmatpush1.msra.mxu0 %v36
  %62 = vmatprep.subr.mxu0 0.0
  %63 = vmatpush1.msra.mxu0 %v37
  %64 = vmatprep.subr.mxu0 0.0
  %65 = vmatpush1.msra.mxu0 %v38
  %66 = vmatprep.subr.mxu0 0.0
  %67 = vmatpush1.msra.mxu0 %v39
  %68 = vmatprep.subr.mxu0 0.0
  %69 = vmatpush1.msra.mxu0 %v40
  %70 = vmatprep.subr.mxu0 0.0
  %71 = vmatpush1.msra.mxu0 %v41
  %72 = vmatprep.subr.mxu0 0.0
  %73 = vmatpush1.msra.mxu0 %v42
  %74 = vmatprep.subr.mxu0 0.0
  %75 = vmatpush1.msra.mxu0 %v43
  %76 = vmatprep.subr.mxu0 0.0
  %77 = vmatpush1.msra.mxu0 0.0
  %78 = vmatprep.subr.mxu0 0.0
  %79 = vmatpush1.msra.mxu0 0.0
  %80 = vmatprep.subr.mxu0 0.0
  %81 = vmatpush1.msra.mxu0 0.0
  %82 = vmatprep.subr.mxu0 0.0
  %83 = vmatpush1.msra.mxu0 0.0
  %84 = vmatprep.subr.mxu0 0.0
  %85 = vmatpush1.msra.mxu0 0.0
  %86 = vmatprep.subr.mxu0 0.0
  %87 = vmatpush1.msra.mxu0 0.0
  %88 = vmatprep.subr.mxu0 0.0
  %89 = vmatpush1.msra.mxu0 0.0
  %90 = vmatprep.subr.mxu0 0.0
  %91 = vmatpush1.msra.mxu0 0.0
  %92 = vmatprep.subr.mxu0 0.0
  %93 = vmatpush1.msra.mxu0 0.0
  %94 = vmatprep.subr.mxu0 0.0
  %95 = vmatpush1.msra.mxu0 0.0
  %96 = vmatprep.subr.mxu0 0.0
  %97 = vmatpush1.msra.mxu0 0.0
  %98 = vmatprep.subr.mxu0 0.0
  %99 = vmatpush1.msra.mxu0 0.0
  %100 = vmatprep.subr.mxu0 0.0
  %101 = vmatpush1.msra.mxu0 0.0
  %102 = vmatprep.subr.mxu0 0.0
  %103 = vmatpush1.msra.mxu0 0.0
  %104 = vmatprep.subr.mxu0 0.0
  %105 = vmatpush1.msra.mxu0 0.0
  %106 = vmatprep.subr.mxu0 0.0
  %107 = vmatpush1.msra.mxu0 0.0
  %108 = vmatprep.mubr.f32.mxu0 0.0
  %109 = vmatmul.mubr.f32.gmra.mrb[0].mxu0 %v27
  %v110 = vpop.f32.mrb[0].mxu0
  %v111 = vadd.f32 0.0, %v110
  %v112 = vpop.f32.mrb[0].mxu0
  %113 = vdwg.mxu0
  %s114 = sld [smem:[#allocation2]]
  %v115 = vstv %s114
  %v116 = vsub.f32 %v111, %v115
  %vm117 = vcmask 7168
  %118 = vst.msk [vmem:[%s4] sm:$0xff] %vm117, %v116
  // Predicated region
  $region18: #{gaussian_log_likelihood.1} parent=0 // pred_check
    _
  $region19: #{gaussian_log_likelihood.1} parent=0 // pred_check_branch
    %120 = sbr.rel (0) target = $region21
  $region20: #{gaussian_log_likelihood.1} parent=0 // pred_region
    _
  $region21: #{gaussian_log_likelihood.1} parent=0 // pred_fallthru
    _
  // Predicated region
  $region22: #{gaussian_log_likelihood.1} parent=0 // pred_check
    _
  $region23: #{gaussian_log_likelihood.1} parent=0 // pred_check_branch
    %122 = sbr.rel (0) target = $region25
  $region24: #{gaussian_log_likelihood.1} parent=0 // pred_region
    _
  $region25: #{gaussian_log_likelihood.1} parent=0 // pred_fallthru
    _

</llo_original>
